<compile_context>
chip_gen: v5e
topology: v5e:2x2
jax: 0.10.0
libtpu: 0.0.40
codegen_flags: <defaults>
</compile_context>

<pallas_src>
import functools

import jax
import jax.numpy as jnp
from jax.experimental import pallas as pl
from jax.experimental.pallas import tpu as pltpu


def _round_up(x, m):
    return (x + m - 1) // m * m


def ffm_reduce_kernel(x_ref, w1_ref, b1_ref, gamma_ref, beta_ref, w2_ref, b2_ref,
                      att_ref, acc_ref, *, inv_hw):
    """Pass 1: accumulate GAP sums per tile; finalize FC1->BN->ReLU->FC2 once."""
    t = pl.program_id(0)

    @pl.when(t == 0)
    def _init():
        acc_ref[...] = jnp.zeros_like(acc_ref)

    # Partial GAP sum over this spatial tile (lane-axis reduce). Read the ref
    # directly so no full tile value stays live across the finalize math.
    acc_ref[...] += jnp.sum(x_ref[...], axis=-1)            # (B, C)

    @pl.when(t == pl.num_programs(0) - 1)
    def _finalize():
        gap = acc_ref[...] * inv_hw                          # (B, C)

        # Linear(num_pred -> fuse_channel)
        h = jnp.dot(gap, w1_ref[...],
                    preferred_element_type=jnp.float32) + b1_ref[...]

        # BatchNorm1d (training mode: batch statistics, biased variance, eps=1e-5)
        mu = jnp.mean(h, axis=0, keepdims=True)
        var = jnp.mean((h - mu) ** 2, axis=0, keepdims=True)
        hn = (h - mu) * jax.lax.rsqrt(var + 1e-5)
        hn = hn * gamma_ref[...] + beta_ref[...]

        # ReLU
        hn = jnp.maximum(hn, 0.0)

        # Linear(fuse_channel -> num_pred)
        att_ref[...] = jnp.dot(hn, w2_ref[...],
                               preferred_element_type=jnp.float32) + b2_ref[...]


def ffm_scale_kernel(att_ref, x_ref, out_ref):
    """Pass 2: out_tile = x_tile * att (broadcast over the spatial lanes)."""
    out_ref[...] = x_ref[...] * att_ref[...][:, :, None]


def ffm_forward(x, params, *, spatial_tile=2048):
    """x: (B, C, H, W) float32 with C == num_pred (module hard-codes 8)."""
    B, C, H, W = x.shape
    HW = H * W
    w1, b1, gamma, beta, w2, b2 = params
    assert w1.shape[0] == C, "FFM requires channels == num_pred"

    # Lane-dense spatial tiles: multiple of 128, capped at `spatial_tile`.
    # Zero-pad the flattened spatial dim so every block is full-width
    # (zeros do not perturb the GAP sum; padded outputs are sliced off below).
    tile = min(spatial_tile, _round_up(HW, 128))
    hw_pad = _round_up(HW, tile)
    n_tiles = hw_pad // tile

    x_flat = x.reshape(B, C, HW)
    if hw_pad != HW:
        x_flat = jnp.pad(x_flat, ((0, 0), (0, 0), (0, hw_pad - HW)))

    itemsize = 4
    weight_bytes = sum(int(p.size) for p in params) * itemsize
    fuse = w1.shape[1]
    const2d = lambda i: (0, 0)

    # ---------- Pass 1: GAP + fuse MLP -> att (B, C) ----------
    att = pl.pallas_call(
        functools.partial(ffm_reduce_kernel, inv_hw=1.0 / HW),
        out_shape=jax.ShapeDtypeStruct((B, C), jnp.float32),
        grid_spec=pltpu.PrefetchScalarGridSpec(
            num_scalar_prefetch=0,
            grid=(n_tiles,),
            in_specs=[
                pl.BlockSpec((B, C, tile), lambda i: (0, 0, i)),  # x tile
                pl.BlockSpec(w1.shape, const2d),                  # weights stay resident
                pl.BlockSpec(b1.shape, const2d),
                pl.BlockSpec(gamma.shape, const2d),
                pl.BlockSpec(beta.shape, const2d),
                pl.BlockSpec(w2.shape, const2d),
                pl.BlockSpec(b2.shape, const2d),
            ],
            out_specs=pl.BlockSpec((B, C), const2d),
            scratch_shapes=[pltpu.VMEM((B, C), jnp.float32)],
        ),
        compiler_params=pltpu.CompilerParams(
            dimension_semantics=("arbitrary",)),
        cost_estimate=pl.CostEstimate(
            flops=B * C * hw_pad + 4 * B * C * fuse,
            transcendentals=fuse,
            bytes_accessed=B * C * hw_pad * itemsize + weight_bytes + B * C * itemsize,
        ),
    )(x_flat, w1, b1, gamma, beta, w2, b2)

    # ---------- Pass 2: broadcast multiply, parallel over spatial tiles ----------
    out_flat = pl.pallas_call(
        ffm_scale_kernel,
        out_shape=jax.ShapeDtypeStruct((B, C, hw_pad), jnp.float32),
        grid_spec=pltpu.PrefetchScalarGridSpec(
            num_scalar_prefetch=0,
            grid=(n_tiles,),
            in_specs=[
                pl.BlockSpec((B, C), const2d),                    # att, resident
                pl.BlockSpec((B, C, tile), lambda i: (0, 0, i)),  # x tile
            ],
            out_specs=pl.BlockSpec((B, C, tile), lambda i: (0, 0, i)),
        ),
        compiler_params=pltpu.CompilerParams(
            dimension_semantics=("parallel",)),
        cost_estimate=pl.CostEstimate(
            flops=B * C * hw_pad,
            transcendentals=0,
            bytes_accessed=2 * B * C * hw_pad * itemsize + B * C * itemsize,
        ),
    )(att, x_flat)

    if hw_pad != HW:
        out_flat = out_flat[:, :, :HW]
    return out_flat.reshape(B, C, H, W)


def ffm_reference(x, params):
    """Pure-JAX reference for correctness checking."""
    w1, b1, gamma, beta, w2, b2 = params
    gap = jnp.mean(x, axis=(2, 3))                               # (B, C)
    h = gap @ w1 + b1
    mu = jnp.mean(h, axis=0, keepdims=True)
    var = jnp.mean((h - mu) ** 2, axis=0, keepdims=True)
    hn = (h - mu) / jnp.sqrt(var + 1e-5) * gamma + beta
    hn = jnp.maximum(hn, 0.0)
    att = hn @ w2 + b2                                           # (B, C)
    return x * att[:, :, None, None]


def init_params(key, num_pred=8, fuse_channel=256):
    k1, k2, k3, k4 = jax.random.split(key, 4)
    w1 = jax.random.normal(k1, (num_pred, fuse_channel), jnp.float32) * 0.1
    b1 = jax.random.normal(k2, (1, fuse_channel), jnp.float32) * 0.1
    gamma = jnp.ones((1, fuse_channel), jnp.float32)   # BN weight
    beta = jnp.zeros((1, fuse_channel), jnp.float32)   # BN bias
    w2 = jax.random.normal(k3, (fuse_channel, num_pred), jnp.float32) * 0.1
    b2 = jax.random.normal(k4, (1, num_pred), jnp.float32) * 0.1
    return (w1, b1, gamma, beta, w2, b2)


if __name__ == "__main__":
    key = jax.random.PRNGKey(0)
    kx, kp = jax.random.split(key)

    # Module hard-codes .view(B, 8, 1, 1) -> C must equal num_pred = 8.
    B, C, H, W = 2, 8, 16, 16
    x = jax.random.normal(kx, (B, C, H, W), jnp.float32)
    params = init_params(kp, num_pred=C, fuse_channel=256)

    out = ffm_forward(x, params)
    jax.block_until_ready(out)

    ref = ffm_reference(x, params)
    assert out.shape == (B, C, H, W)
    assert jnp.allclose(out, ref, atol=1e-4, rtol=1e-4), "mismatch vs reference"
    print("KERNEL_OK")
</pallas_src>

<mosaic_0001>
module attributes {stable_mosaic.version = 11 : i64} {
  func.func @ffm_reduce_kernel(%arg0: i32, %arg1: memref<2x8x256xf32, #tpu.memory_space<vmem>>, %arg2: memref<8x256xf32, #tpu.memory_space<vmem>>, %arg3: memref<1x256xf32, #tpu.memory_space<vmem>>, %arg4: memref<1x256xf32, #tpu.memory_space<vmem>>, %arg5: memref<1x256xf32, #tpu.memory_space<vmem>>, %arg6: memref<256x8xf32, #tpu.memory_space<vmem>>, %arg7: memref<1x8xf32, #tpu.memory_space<vmem>>, %arg8: memref<2x8xf32, #tpu.memory_space<vmem>>, %arg9: memref<2x8xf32, #tpu.memory_space<vmem>>) attributes {dimension_semantics = [#tpu.dimension_semantics<arbitrary>], iteration_bounds = array<i64: 1>, scalar_prefetch = 0 : i64, scratch_operands = 1 : i64, tpu.core_type = #tpu.core_type<tc>, window_params = [{transform_indices = @transform_0, window_bounds = array<i64: 2, 8, 256>}, {pipeline_mode = #tpu.pipeline_mode<synchronous>, transform_indices = @transform_1, window_bounds = array<i64: 8, 256>}, {pipeline_mode = #tpu.pipeline_mode<synchronous>, transform_indices = @transform_2, window_bounds = array<i64: 1, 256>}, {pipeline_mode = #tpu.pipeline_mode<synchronous>, transform_indices = @transform_3, window_bounds = array<i64: 1, 256>}, {pipeline_mode = #tpu.pipeline_mode<synchronous>, transform_indices = @transform_4, window_bounds = array<i64: 1, 256>}, {pipeline_mode = #tpu.pipeline_mode<synchronous>, transform_indices = @transform_5, window_bounds = array<i64: 256, 8>}, {pipeline_mode = #tpu.pipeline_mode<synchronous>, transform_indices = @transform_6, window_bounds = array<i64: 1, 8>}, {pipeline_mode = #tpu.pipeline_mode<synchronous>, transform_indices = @transform_7, window_bounds = array<i64: 2, 8>}]} {
    %c0_i32 = arith.constant 0 : i32
    %0 = arith.cmpi eq, %arg0, %c0_i32 : i32
    %1 = arith.extui %0 : i1 to i32
    %c0_i32_0 = arith.constant 0 : i32
    %2 = arith.cmpi ne, %1, %c0_i32_0 : i32
    scf.if %2 {
      %cst_9 = arith.constant 0.000000e+00 : f32
      %11 = vector.broadcast %cst_9 : f32 to vector<2x8xf32>
      %c0_10 = arith.constant 0 : index
      %c0_11 = arith.constant 0 : index
      %12 = vector.load %arg9[%c0_10, %c0_11] : memref<2x8xf32, #tpu.memory_space<vmem>>, vector<2x8xf32>
      tpu.vector_store %arg9[%c0_10, %c0_11], %11 {strides = array<i32>} : memref<2x8xf32, #tpu.memory_space<vmem>>, vector<2x8xf32>,
    } else {
    }
    %c0 = arith.constant 0 : index
    %c0_1 = arith.constant 0 : index
    %3 = vector.load %arg9[%c0, %c0_1] : memref<2x8xf32, #tpu.memory_space<vmem>>, vector<2x8xf32>
    %c0_2 = arith.constant 0 : index
    %c0_3 = arith.constant 0 : index
    %c0_4 = arith.constant 0 : index
    %4 = vector.load %arg1[%c0_2, %c0_3, %c0_4] : memref<2x8x256xf32, #tpu.memory_space<vmem>>, vector<2x8x256xf32>
    %cst = arith.constant dense<0.000000e+00> : vector<2x8xf32>
    %5 = vector.multi_reduction <add>, %4, %cst [2] : vector<2x8x256xf32> to vector<2x8xf32>
    %6 = arith.addf %3, %5 : vector<2x8xf32>
    %c0_5 = arith.constant 0 : index
    %c0_6 = arith.constant 0 : index
    %7 = vector.load %arg9[%c0_5, %c0_6] : memref<2x8xf32, #tpu.memory_space<vmem>>, vector<2x8xf32>
    tpu.vector_store %arg9[%c0_5, %c0_6], %6 {strides = array<i32>} : memref<2x8xf32, #tpu.memory_space<vmem>>, vector<2x8xf32>,
    %c0_i32_7 = arith.constant 0 : i32
    %8 = arith.cmpi eq, %arg0, %c0_i32_7 : i32
    %9 = arith.extui %8 : i1 to i32
    %c0_i32_8 = arith.constant 0 : i32
    %10 = arith.cmpi ne, %9, %c0_i32_8 : i32
    scf.if %10 {
      %c0_9 = arith.constant 0 : index
      %c0_10 = arith.constant 0 : index
      %11 = vector.load %arg9[%c0_9, %c0_10] : memref<2x8xf32, #tpu.memory_space<vmem>>, vector<2x8xf32>
      %cst_11 = arith.constant 3.906250e-03 : f32
      %12 = vector.broadcast %cst_11 : f32 to vector<2x8xf32>
      %13 = arith.mulf %11, %12 : vector<2x8xf32>
      %c0_12 = arith.constant 0 : index
      %c0_13 = arith.constant 0 : index
      %14 = vector.load %arg2[%c0_12, %c0_13] : memref<8x256xf32, #tpu.memory_space<vmem>>, vector<8x256xf32>
      %cst_14 = arith.constant dense<0.000000e+00> : vector<2x256xf32>
      %15 = tpu.matmul %13, %14, %cst_14 {dimension_numbers = #tpu.dot_dimension_numbers<[1], [0], [0], [1], [0, 0, 1, 1], [], []>} : vector<2x8xf32>, vector<8x256xf32>, vector<2x256xf32> -> vector<2x256xf32>
      %c0_15 = arith.constant 0 : index
      %c0_16 = arith.constant 0 : index
      %16 = vector.load %arg3[%c0_15, %c0_16] : memref<1x256xf32, #tpu.memory_space<vmem>>, vector<1x256xf32>
      %17 = vector.broadcast %16 : vector<1x256xf32> to vector<2x256xf32>
      %18 = arith.addf %15, %17 : vector<2x256xf32>
      %cst_17 = arith.constant dense<0.000000e+00> : vector<256xf32>
      %19 = vector.multi_reduction <add>, %18, %cst_17 [0] : vector<2x256xf32> to vector<256xf32>
      %20 = vector.shape_cast %19 : vector<256xf32> to vector<1x256xf32>
      %cst_18 = arith.constant 2.000000e+00 : f32
      %21 = vector.broadcast %cst_18 : f32 to vector<1x256xf32>
      %22 = arith.divf %20, %21 : vector<1x256xf32>
      %23 = vector.broadcast %22 : vector<1x256xf32> to vector<2x256xf32>
      %24 = arith.subf %18, %23 : vector<2x256xf32>
      %25 = arith.mulf %24, %24 : vector<2x256xf32>
      %cst_19 = arith.constant dense<0.000000e+00> : vector<256xf32>
      %26 = vector.multi_reduction <add>, %25, %cst_19 [0] : vector<2x256xf32> to vector<256xf32>
      %27 = vector.shape_cast %26 : vector<256xf32> to vector<1x256xf32>
      %cst_20 = arith.constant 2.000000e+00 : f32
      %28 = vector.broadcast %cst_20 : f32 to vector<1x256xf32>
      %29 = arith.divf %27, %28 : vector<1x256xf32>
      %30 = vector.broadcast %22 : vector<1x256xf32> to vector<2x256xf32>
      %31 = arith.subf %18, %30 : vector<2x256xf32>
      %cst_21 = arith.constant 9.99999974E-6 : f32
      %32 = vector.broadcast %cst_21 : f32 to vector<1x256xf32>
      %33 = arith.addf %29, %32 : vector<1x256xf32>
      %34 = math.rsqrt %33 : vector<1x256xf32>
      %35 = vector.broadcast %34 : vector<1x256xf32> to vector<2x256xf32>
      %36 = arith.mulf %31, %35 : vector<2x256xf32>
      %c0_22 = arith.constant 0 : index
      %c0_23 = arith.constant 0 : index
      %37 = vector.load %arg4[%c0_22, %c0_23] : memref<1x256xf32, #tpu.memory_space<vmem>>, vector<1x256xf32>
      %38 = vector.broadcast %37 : vector<1x256xf32> to vector<2x256xf32>
      %39 = arith.mulf %36, %38 : vector<2x256xf32>
      %c0_24 = arith.constant 0 : index
      %c0_25 = arith.constant 0 : index
      %40 = vector.load %arg5[%c0_24, %c0_25] : memref<1x256xf32, #tpu.memory_space<vmem>>, vector<1x256xf32>
      %41 = vector.broadcast %40 : vector<1x256xf32> to vector<2x256xf32>
      %42 = arith.addf %39, %41 : vector<2x256xf32>
      %cst_26 = arith.constant 0.000000e+00 : f32
      %43 = vector.broadcast %cst_26 : f32 to vector<2x256xf32>
      %44 = arith.maximumf %42, %43 : vector<2x256xf32>
      %c0_27 = arith.constant 0 : index
      %c0_28 = arith.constant 0 : index
      %45 = vector.load %arg6[%c0_27, %c0_28] : memref<256x8xf32, #tpu.memory_space<vmem>>, vector<256x8xf32>
      %cst_29 = arith.constant dense<0.000000e+00> : vector<2x8xf32>
      %46 = tpu.matmul %44, %45, %cst_29 {dimension_numbers = #tpu.dot_dimension_numbers<[1], [0], [0], [1], [0, 0, 1, 1], [], []>} : vector<2x256xf32>, vector<256x8xf32>, vector<2x8xf32> -> vector<2x8xf32>
      %c0_30 = arith.constant 0 : index
      %c0_31 = arith.constant 0 : index
      %47 = vector.load %arg7[%c0_30, %c0_31] : memref<1x8xf32, #tpu.memory_space<vmem>>, vector<1x8xf32>
      %48 = vector.broadcast %47 : vector<1x8xf32> to vector<2x8xf32>
      %49 = arith.addf %46, %48 : vector<2x8xf32>
      %c0_32 = arith.constant 0 : index
      %c0_33 = arith.constant 0 : index
      %50 = vector.load %arg8[%c0_32, %c0_33] : memref<2x8xf32, #tpu.memory_space<vmem>>, vector<2x8xf32>
      tpu.vector_store %arg8[%c0_32, %c0_33], %49 {strides = array<i32>} : memref<2x8xf32, #tpu.memory_space<vmem>>, vector<2x8xf32>,
    } else {
    }
    return
  }
  func.func @transform_0(%arg0: i32) -> (i32, i32, i32) {
    %c0_i32 = arith.constant 0 : i32
    %c0_i32_0 = arith.constant 0 : i32
    %c0_i32_1 = arith.constant 0 : i32
    return %c0_i32, %c0_i32_0, %arg0 : i32, i32, i32
  }
  func.func @transform_1(%arg0: i32) -> (i32, i32) {
    %c0_i32 = arith.constant 0 : i32
    %c0_i32_0 = arith.constant 0 : i32
    %c0_i32_1 = arith.constant 0 : i32
    return %c0_i32, %c0_i32_0 : i32, i32
  }
  func.func @transform_2(%arg0: i32) -> (i32, i32) {
    %c0_i32 = arith.constant 0 : i32
    %c0_i32_0 = arith.constant 0 : i32
    %c0_i32_1 = arith.constant 0 : i32
    return %c0_i32, %c0_i32_0 : i32, i32
  }
  func.func @transform_3(%arg0: i32) -> (i32, i32) {
    %c0_i32 = arith.constant 0 : i32
    %c0_i32_0 = arith.constant 0 : i32
    %c0_i32_1 = arith.constant 0 : i32
    return %c0_i32, %c0_i32_0 : i32, i32
  }
  func.func @transform_4(%arg0: i32) -> (i32, i32) {
    %c0_i32 = arith.constant 0 : i32
    %c0_i32_0 = arith.constant 0 : i32
    %c0_i32_1 = arith.constant 0 : i32
    return %c0_i32, %c0_i32_0 : i32, i32
  }
  func.func @transform_5(%arg0: i32) -> (i32, i32) {
    %c0_i32 = arith.constant 0 : i32
    %c0_i32_0 = arith.constant 0 : i32
    %c0_i32_1 = arith.constant 0 : i32
    return %c0_i32, %c0_i32_0 : i32, i32
  }
  func.func @transform_6(%arg0: i32) -> (i32, i32) {
    %c0_i32 = arith.constant 0 : i32
    %c0_i32_0 = arith.constant 0 : i32
    %c0_i32_1 = arith.constant 0 : i32
    return %c0_i32, %c0_i32_0 : i32, i32
  }
  func.func @transform_7(%arg0: i32) -> (i32, i32) {
    %c0_i32 = arith.constant 0 : i32
    %c0_i32_0 = arith.constant 0 : i32
    %c0_i32_1 = arith.constant 0 : i32
    return %c0_i32, %c0_i32_0 : i32, i32
  }
}

</mosaic_0001>

<llo_original>
// kernel: tpu_custom_call.1
$region0: #{tpu_custom_call.1}
  #allocation0 [shape = 'u32[]', space=smem, size = 0x4, offset = 0x4, fixed_abs, tag = 'smem constant byte address 0x4 - core index']
  #allocation1 [shape = 'u32[72,128]{1,0:T(1,128)}', space=vmem, size = 0x9000, scoped, tag = 'internal scratch']
  #allocation2 [shape = 'f32[2,8]{1,0:T(2,128)}', space=vmem, size = 0x400, scoped, tag = 'scratch operand']
  %s0 = inlined_call_operand.vmem [shape: f32[2,8,256], index: 0, kind: input, shape index: {}]
  %s1 = inlined_call_operand.vmem [shape: f32[8,256], index: 1, kind: input, shape index: {}]
  %s2 = inlined_call_operand.vmem [shape: f32[1,256], index: 2, kind: input, shape index: {}]
  %s3 = inlined_call_operand.vmem [shape: f32[1,256], index: 3, kind: input, shape index: {}]
  %s4 = inlined_call_operand.vmem [shape: f32[1,256], index: 4, kind: input, shape index: {}]
  %s5 = inlined_call_operand.vmem [shape: f32[256,8], index: 5, kind: input, shape index: {}]
  %s6 = inlined_call_operand.vmem [shape: f32[1,8], index: 6, kind: input, shape index: {}]
  %s7 = inlined_call_operand.hbm [shape: f32[2,8], index: 7, kind: output, shape index: {}]
  %s8 = sld [smem:[#allocation0]]
  $region46: #{tpu_custom_call.1} parent=0
    _
  %s10 = ssub.s32 1, %s8
  %s11 = scalar_select 0, %s10, %s8
  $region1: #{tpu_custom_call.1} parent=0
    #allocation3 [shape = 'u8[1024]{0}', space=vmem, size = 0x400, scoped, tag = 'output window, operand 0, single buffered']
    #allocation4 [shape = 's32[1]{0}', space=sflag, size = 0x4, scoped, tag = 'scoped memory for tpu_custom_call.1']
    %12 = vsyncpa [#allocation4], 0
    // Predicated region
    $region2: #{tpu_custom_call.1} parent=1 // pred_check
      _
    $region3: #{tpu_custom_call.1} parent=1 // pred_check_branch
      %14 = sbr.rel (0) target = $region5
    $region4: #{tpu_custom_call.1} parent=1 // pred_region
      _
    $region5: #{tpu_custom_call.1} parent=1 // pred_fallthru
      _
    // Predicated region
    $region6: #{tpu_custom_call.1} parent=1 // pred_check
      _
    $region7: #{tpu_custom_call.1} parent=1 // pred_check_branch
      %16 = sbr.rel (0) target = $region9
    $region8: #{tpu_custom_call.1} parent=1 // pred_region
      _
    $region9: #{tpu_custom_call.1} parent=1 // pred_fallthru
      _
    // Predicated region
    $region10: #{tpu_custom_call.1} parent=1 // pred_check
      _
    $region11: #{tpu_custom_call.1} parent=1 // pred_check_branch
      %18 = sbr.rel (0) target = $region13
    $region12: #{tpu_custom_call.1} parent=1 // pred_region
      _
    $region13: #{tpu_custom_call.1} parent=1 // pred_fallthru
      _
    // Predicated region
    $region14: #{tpu_custom_call.1} parent=1 // pred_check
      _
    $region15: #{tpu_custom_call.1} parent=1 // pred_check_branch
      %20 = sbr.rel (0) target = $region17
    $region16: #{tpu_custom_call.1} parent=1 // pred_region
      _
    $region17: #{tpu_custom_call.1} parent=1 // pred_fallthru
      _
    // Predicated region
    $region18: #{tpu_custom_call.1} parent=1 // pred_check
      _
    $region19: #{tpu_custom_call.1} parent=1 // pred_check_branch
      %22 = sbr.rel (0) target = $region21
    $region20: #{tpu_custom_call.1} parent=1 // pred_region
      _
    $region21: #{tpu_custom_call.1} parent=1 // pred_fallthru
      _
    // Predicated region
    $region22: #{tpu_custom_call.1} parent=1 // pred_check
      _
    $region23: #{tpu_custom_call.1} parent=1 // pred_check_branch
      %24 = sbr.rel (0) target = $region25
    $region24: #{tpu_custom_call.1} parent=1 // pred_region
      _
    $region25: #{tpu_custom_call.1} parent=1 // pred_fallthru
      _
    // Predicated region
    $region26: #{tpu_custom_call.1} parent=1 // pred_check
      _
    $region27: #{tpu_custom_call.1} parent=1 // pred_check_branch
      %26 = sbr.rel (0) target = $region29
    $region28: #{tpu_custom_call.1} parent=1 // pred_region
      _
    $region29: #{tpu_custom_call.1} parent=1 // pred_fallthru
      _
    %p27 = scmp.eq.s32.totalorder 0, 0
    // Predicated region
    $region30: #{tpu_custom_call.1} parent=1 // pred_check
      %p28 = pneg %p27
    $region31: #{tpu_custom_call.1} parent=1 // pred_check_branch
      %30 = sbr.rel (%p28) target = $region33
    $region32: #{tpu_custom_call.1} parent=1 // pred_region
      %vm31 = vcmask 58368
      %32 = vst.msk [vmem:[#allocation2] sm:$0x3] %vm31, 0.0
    $region33: #{tpu_custom_call.1} parent=1 // pred_fallthru
      _
    %v33 = vld [vmem:[#allocation2] sm:$0x3]
    %v34 = vld [vmem:[%s0] sm:$0xff]
    %v35 = vld [vmem:[%s0 + $0x8] sm:$0xff]
    %v36 = vld [vmem:[%s0 + $0x10] sm:$0xff]
    %v37 = vld [vmem:[%s0 + $0x18] sm:$0xff]
    %v38 = vadd.f32 %v34, %v35
    %39 = vadd.xlane.f32.xlu0 %v38
    %v40 = vpop.xlane.xlu0 %39
    %v41 = vadd.f32 %v36, %v37
    %42 = vadd.xlane.f32.xlu0 %v41
    %v43 = vpop.xlane.xlu0 %42
    %v46 = vlaneseq
    %v47 = vand.u32 %v46, 127
    %v48 = vperm.slane %v40, %v47
    %v49 = vperm.slane %v43, %v47
    %vm50 = vcmask 1041409
    %v51 = vsel %vm50, %v49, %v48
    %v53 = vadd.f32 %v33, %v51
    %vm54 = vcmask 58368
    %55 = vst.msk [vmem:[#allocation2] sm:$0x3] %vm54, %v53
    // Predicated region
    $region34: #{tpu_custom_call.1} parent=1 // pred_check
      %p56 = pneg %p27
    $region35: #{tpu_custom_call.1} parent=1 // pred_check_branch
      %58 = sbr.rel (%p56) target = $region37
    $region36: #{tpu_custom_call.1} parent=1 // pred_region
      %v59 = vld [vmem:[#allocation2] sm:$0x3]
      %v60 = vmul.f32 %v59, 0.00390625
      %v61 = vld [vmem:[%s1] sm:$0xff]
      %v62 = vld [vmem:[%s1 + $0x8] sm:$0xff]
      %v63 = vld [vmem:[%s2] sm:$0x3]
      %v65 = vperm.slane %v63, 0
      %v66 = vperm.slane %v63, 1
      %vm69 = vcmask 64512
      %v71 = vsel %vm69, %v60, 0
      %73 = vmatpush.msra.mxu0 0.0
      %74 = vmatpush.msra.mxu0 0.0
      %75 = vmatpush.msra.mxu0 0.0
      %76 = vmatpush.msra.mxu0 0.0
      %77 = vmatpush.msra.mxu0 0.0
      %78 = vmatpush.msra.mxu0 0.0
      %79 = vmatpush.msra.mxu0 0.0
      %80 = vmatpush.msra.mxu0 0.0
      %81 = vmatpush.msra.mxu0 0.0
      %82 = vmatpush.msra.mxu0 0.0
      %83 = vmatpush.msra.mxu0 0.0
      %84 = vmatpush.msra.mxu0 0.0
      %85 = vmatpush.msra.mxu0 0.0
      %86 = vmatpush.msra.mxu0 0.0
      %87 = vmatpush.msra.mxu0 0.0
      %88 = vmatpush.msra.mxu0 %v61
      %89 = vmatmul.f32.gmra.mxu0 %v71
      %v90 = vpop.f32.mrf.mxu0
      %v91 = vadd.f32 %v65, %v90
      %92 = vdwg.mxu0
      %93 = vmatpush.msra.mxu0 0.0
      %94 = vmatpush.msra.mxu0 0.0
      %95 = vmatpush.msra.mxu0 0.0
      %96 = vmatpush.msra.mxu0 0.0
      %97 = vmatpush.msra.mxu0 0.0
      %98 = vmatpush.msra.mxu0 0.0
      %99 = vmatpush.msra.mxu0 0.0
      %100 = vmatpush.msra.mxu0 0.0
      %101 = vmatpush.msra.mxu0 0.0
      %102 = vmatpush.msra.mxu0 0.0
      %103 = vmatpush.msra.mxu0 0.0
      %104 = vmatpush.msra.mxu0 0.0
      %105 = vmatpush.msra.mxu0 0.0
      %106 = vmatpush.msra.mxu0 0.0
      %107 = vmatpush.msra.mxu0 0.0
      %108 = vmatpush.msra.mxu0 %v62
      %109 = vmatmul.f32.gmra.mxu0 %v71
      %v110 = vpop.f32.mrf.mxu0
      %v111 = vadd.f32 %v66, %v110
      %112 = vdwg.mxu0
      %vm113 = vcmask 1041408
      %v114 = vsel %vm113, %v91, 0.0
      %v115 = vrot.slane %v114, 4
      %v116 = vadd.f32 %v114, %v115
      %v117 = vrot.slane %v116, 2
      %v118 = vadd.f32 %v116, %v117
      %v119 = vrot.slane %v118, 1
      %v120 = vadd.f32 %v118, %v119
      %v121 = vsel %vm113, %v111, 0.0
      %v122 = vrot.slane %v121, 4
      %v123 = vadd.f32 %v121, %v122
      %v124 = vrot.slane %v123, 2
      %v125 = vadd.f32 %v123, %v124
      %v126 = vrot.slane %v125, 1
      %v127 = vadd.f32 %v125, %v126
      %v128 = vrcp.pop 2.0
      %v129 = vmul.f32 2.0, %v128
      %v130 = vsub.f32 1.0, %v129
      %v131 = vmul.f32 %v128, %v130
      %v132 = vadd.f32 %v128, %v131
      %vm133 = vweird.f32 %v128
      %v134 = vsel %vm133, %v128, %v132
      %v135 = vmul.f32 %v120, %v134
      %v136 = vmul.f32 %v127, %v134
      %v137 = vsub.f32 %v91, %v135
      %v138 = vsub.f32 %v111, %v136
      %v139 = vmul.f32 %v137, %v137
      %v140 = vmul.f32 %v138, %v138
      %v141 = vsel %vm113, %v139, 0.0
      %v142 = vrot.slane %v141, 4
      %v143 = vadd.f32 %v141, %v142
      %v144 = vrot.slane %v143, 2
      %v145 = vadd.f32 %v143, %v144
      %v146 = vrot.slane %v145, 1
      %v147 = vadd.f32 %v145, %v146
      %v148 = vsel %vm113, %v140, 0.0
      %v149 = vrot.slane %v148, 4
      %v150 = vadd.f32 %v148, %v149
      %v151 = vrot.slane %v150, 2
      %v152 = vadd.f32 %v150, %v151
      %v153 = vrot.slane %v152, 1
      %v154 = vadd.f32 %v152, %v153
      %v155 = vmul.f32 %v147, %v134
      %v156 = vmul.f32 %v154, %v134
      %v157 = vadd.f32 %v155, 1e-05
      %v158 = vadd.f32 %v156, 1e-05
      %v159 = vrsqrt.pop %v157
      %v160 = vmul.f32 %v159, %v157
      %v161 = vmul.f32 %v160, %v159
      %v162 = vmul.f32 0.5, %v161
      %v163 = vsub.f32 1.5, %v162
      %v164 = vmul.f32 %v159, %v163
      %vm165 = vweird.f32 %v157
      %vm166 = vweird.f32 %v159
      %vm167 = vmor %vm165, %vm166
      %v168 = vsel %vm167, %v159, %v164
      %v169 = vrsqrt.pop %v158
      %v170 = vmul.f32 %v169, %v158
      %v171 = vmul.f32 %v170, %v169
      %v172 = vmul.f32 0.5, %v171
      %v173 = vsub.f32 1.5, %v172
      %v174 = vmul.f32 %v169, %v173
      %vm175 = vweird.f32 %v158
      %vm176 = vweird.f32 %v169
      %vm177 = vmor %vm175, %vm176
      %v178 = vsel %vm177, %v169, %v174
      %v179 = vmul.f32 %v137, %v168
      %v180 = vmul.f32 %v138, %v178
      %v181 = vld [vmem:[%s3] sm:$0x3]
      %v183 = vperm.slane %v181, 0
      %v184 = vperm.slane %v181, 1
      %v187 = vmul.f32 %v179, %v183
      %v188 = vmul.f32 %v180, %v184
      %v189 = vld [vmem:[%s4] sm:$0x3]
      %v191 = vperm.slane %v189, 0
      %v192 = vperm.slane %v189, 1
      %v195 = vadd.f32 %v187, %v191
      %v196 = vadd.f32 %v188, %v192
      %v197 = vmax.f32 %v195, 0.0
      %v198 = vmax.f32 %v196, 0.0
      %v199 = vld [vmem:[%s5] sm:$0xff]
      %v200 = vld [vmem:[%s5 + $0x8] sm:$0xff]
      %v201 = vld [vmem:[%s5 + $0x10] sm:$0xff]
      %v202 = vld [vmem:[%s5 + $0x18] sm:$0xff]
      %v203 = vld [vmem:[%s5 + $0x20] sm:$0xff]
      %v204 = vld [vmem:[%s5 + $0x28] sm:$0xff]
      %v205 = vld [vmem:[%s5 + $0x30] sm:$0xff]
      %v206 = vld [vmem:[%s5 + $0x38] sm:$0xff]
      %v207 = vld [vmem:[%s5 + $0x40] sm:$0xff]
      %v208 = vld [vmem:[%s5 + $0x48] sm:$0xff]
      %v209 = vld [vmem:[%s5 + $0x50] sm:$0xff]
      %v210 = vld [vmem:[%s5 + $0x58] sm:$0xff]
      %v211 = vld [vmem:[%s5 + $0x60] sm:$0xff]
      %v212 = vld [vmem:[%s5 + $0x68] sm:$0xff]
      %v213 = vld [vmem:[%s5 + $0x70] sm:$0xff]
      %v214 = vld [vmem:[%s5 + $0x78] sm:$0xff]
      %v215 = vld [vmem:[%s5 + $0x80] sm:$0xff]
      %v216 = vld [vmem:[%s5 + $0x88] sm:$0xff]
      %v217 = vld [vmem:[%s5 + $0x90] sm:$0xff]
      %v218 = vld [vmem:[%s5 + $0x98] sm:$0xff]
      %v219 = vld [vmem:[%s5 + $0xa0] sm:$0xff]
      %v220 = vld [vmem:[%s5 + $0xa8] sm:$0xff]
      %v221 = vld [vmem:[%s5 + $0xb0] sm:$0xff]
      %v222 = vld [vmem:[%s5 + $0xb8] sm:$0xff]
      %v223 = vld [vmem:[%s5 + $0xc0] sm:$0xff]
      %v224 = vld [vmem:[%s5 + $0xc8] sm:$0xff]
      %v225 = vld [vmem:[%s5 + $0xd0] sm:$0xff]
      %v226 = vld [vmem:[%s5 + $0xd8] sm:$0xff]
      %v227 = vld [vmem:[%s5 + $0xe0] sm:$0xff]
      %v228 = vld [vmem:[%s5 + $0xe8] sm:$0xff]
      %v229 = vld [vmem:[%s5 + $0xf0] sm:$0xff]
      %v230 = vld [vmem:[%s5 + $0xf8] sm:$0xff]
      %v231 = vld [vmem:[%s6] sm:$0x1]
      %v233 = vperm.slane %v231, 0
      %235 = vmatpush.msra.mxu0 %v214
      %236 = vmatpush.msra.mxu0 %v213
      %237 = vmatpush.msra.mxu0 %v212
      %238 = vmatpush.msra.mxu0 %v211
      %239 = vmatpush.msra.mxu0 %v210
      %240 = vmatpush.msra.mxu0 %v209
      %241 = vmatpush.msra.mxu0 %v208
      %242 = vmatpush.msra.mxu0 %v207
      %243 = vmatpush.msra.mxu0 %v206
      %244 = vmatpush.msra.mxu0 %v205
      %245 = vmatpush.msra.mxu0 %v204
      %246 = vmatpush.msra.mxu0 %v203
      %247 = vmatpush.msra.mxu0 %v202
      %248 = vmatpush.msra.mxu0 %v201
      %249 = vmatpush.msra.mxu0 %v200
      %250 = vmatpush.msra.mxu0 %v199
      %251 = vmatmul.f32.gmra.mxu0 %v197
      %v252 = vpop.f32.mrf.mxu0
      %v253 = vadd.f32 %v233, %v252
      %254 = vdwg.mxu0
      %255 = vmatpush.msra.mxu0 %v230
      %256 = vmatpush.msra.mxu0 %v229
      %257 = vmatpush.msra.mxu0 %v228
      %258 = vmatpush.msra.mxu0 %v227
      %259 = vmatpush.msra.mxu0 %v226
      %260 = vmatpush.msra.mxu0 %v225
      %261 = vmatpush.msra.mxu0 %v224
      %262 = vmatpush.msra.mxu0 %v223
      %263 = vmatpush.msra.mxu0 %v222
      %264 = vmatpush.msra.mxu0 %v221
      %265 = vmatpush.msra.mxu0 %v220
      %266 = vmatpush.msra.mxu0 %v219
      %267 = vmatpush.msra.mxu0 %v218
      %268 = vmatpush.msra.mxu0 %v217
      %269 = vmatpush.msra.mxu0 %v216
      %270 = vmatpush.msra.mxu0 %v215
      %271 = vmatmul.f32.gmra.mxu0 %v198
      %v272 = vpop.f32.mrf.mxu0
      %v273 = vadd.f32 %v253, %v272
      %274 = vdwg.mxu0
      %275 = vst.msk [vmem:[#allocation3] sm:$0x3] %vm54, %v273
    $region37: #{tpu_custom_call.1} parent=1 // pred_fallthru
      _
    // Predicated region
    $region38: #{tpu_custom_call.1} parent=1 // pred_check
      _
    $region39: #{tpu_custom_call.1} parent=1 // pred_check_branch
      %277 = sbr.rel (0) target = $region41
    $region40: #{tpu_custom_call.1} parent=1 // pred_region
      %279 = vsyncadd [#allocation4], 0
      %s281 = sshll.u32 [#allocation3], 4
      %s282 = int_to_ptr.vmem [resolvable:$true] %s281
      %s283 = sshll.u32 %s7, 4
      %s284 = int_to_ptr.hbm [resolvable:$true] %s283
      %286 = dma.vmem_to_hbm [thread:$0]  %s282, 32, %s284, [#allocation4]
    $region41: #{tpu_custom_call.1} parent=1 // pred_fallthru
      _
    // Predicated region
    $region42: #{tpu_custom_call.1} parent=1 // pred_check
      _
    $region43: #{tpu_custom_call.1} parent=1 // pred_check_branch
      %288 = sbr.rel (0) target = $region45
    $region44: #{tpu_custom_call.1} parent=1 // pred_region
      %290 = dma.done [#allocation4], 32
    $region45: #{tpu_custom_call.1} parent=1 // pred_fallthru
      _
    %291 = vsyncpa [#allocation4], 1

</llo_original>
